<compile_context>
chip_gen: v7x
topology: tpu7x:2x2x1
jax: 0.10.0
libtpu: 0.0.40
codegen_flags: <defaults>
</compile_context>

<pallas_src>
import jax
import jax.numpy as jnp
from jax.experimental import pallas as pl
from jax.experimental.pallas import tpu as pltpu


def autoencoder_kernel(x_ref, gwt_ref, gb_ref, hwt_ref, hb_ref, o_ref):
    """Fused forward: sigmoid(sigmoid(x @ Wg^T + bg) @ Wh^T + bh).

    x_ref  : (tm, Q) f32   input tile (streamed over the batch)
    gwt_ref: (Q, K)  bf16  encoder weight, pre-transposed to (in, out)
    gb_ref : (1, K)  f32   encoder bias
    hwt_ref: (K, Q)  bf16  decoder weight, pre-transposed to (in, out)
    hb_ref : (1, Q)  f32   decoder bias
    o_ref  : (tm, Q)       output tile
    """
    # bf16 operands on the MXU, f32 accumulation; bias add + activation stay in f32
    # (v5e VPU/EUP have no bf16 path).
    x = x_ref[...].astype(jnp.bfloat16)
    inner = jnp.dot(x, gwt_ref[...], preferred_element_type=jnp.float32) + gb_ref[...]
    # sigmoid(z) == 0.5*tanh(0.5*z) + 0.5 : a single EUP push per element, exact,
    # and well-behaved for large-magnitude pre-activations.
    s_inner = 0.5 * jnp.tanh(0.5 * inner) + 0.5

    outer = jnp.dot(s_inner.astype(jnp.bfloat16), hwt_ref[...],
                    preferred_element_type=jnp.float32) + hb_ref[...]
    o_ref[...] = (0.5 * jnp.tanh(0.5 * outer) + 0.5).astype(o_ref.dtype)


def prepare_params(g_w, g_b, h_w, h_b):
    """One-time parameter transform (weights are reused across calls).

    PyTorch nn.Linear stores weights as (out_features, in_features); transpose them to
    (in, out) and cast to bf16 so the kernel consumes them with no per-step transpose or
    cast, and with half the HBM/DMA bytes. Biases become lane-broadcastable rows (f32).
    """
    K, Q = g_w.shape
    assert h_w.shape == (Q, K)
    gwt = jnp.asarray(g_w).T.astype(jnp.bfloat16)            # (Q, K)
    hwt = jnp.asarray(h_w).T.astype(jnp.bfloat16)            # (K, Q)
    gb = jnp.asarray(g_b, jnp.float32).reshape(1, K)
    hb = jnp.asarray(h_b, jnp.float32).reshape(1, Q)
    return gwt, gb, hwt, hb


def _pick_tm(batch):
    """Row-tile selection.

    Tiny batches: one grid step (the kernel is launch + weight-DMA bound there; splitting
    would only duplicate the weight DMA per core). Larger batches: the largest multiple of
    8 dividing B, capped at min(1024, B//2) -> per-step overhead amortized AND >= 2 grid
    steps so both v7x TensorCores are used.
    """
    if batch <= 64:
        return batch
    cap = min(1024, batch // 2)
    tm = 8
    for cand in range(8, cap + 1, 8):
        if batch % cand == 0:
            tm = cand
    if batch % tm != 0:      # batch not a multiple of 8 -> fall back to a single step
        tm = batch
    return tm


def autoencoder_forward(x, gwt, gb, hwt, hb, *, tm=None, out_dtype=None):
    """x: (B, Q) f32.  gwt: (Q, K) bf16, gb: (1, K), hwt: (K, Q) bf16, hb: (1, Q)
    (as produced by prepare_params)."""
    B, Q = x.shape
    K = gwt.shape[1]
    assert gwt.shape == (Q, K) and hwt.shape == (K, Q)
    assert gb.shape == (1, K) and hb.shape == (1, Q)

    if tm is None:
        tm = _pick_tm(B)
    assert B % tm == 0, "batch must be divisible by the row tile"
    if out_dtype is None:
        # On v5e, pass out_dtype=jnp.bfloat16 if downstream permits: halves writeback
        # bytes and vector-store pressure on the slowest-HBM generation.
        out_dtype = x.dtype

    # Grid-invariant params: single-buffered (constant index_map -> never re-DMA'd).
    resident = dict(pipeline_mode=pl.Buffered(1))

    # Explicit scoped-VMEM limit so large row tiles stay usable when Q/K scale;
    # capped below v7x's 64 MiB physical VMEM.
    est = (2 * 2 * tm * Q * 4        # double-buffered x + out tiles (f32)
           + 2 * Q * K * 2           # resident bf16 weights (single-buffered)
           + (K + Q) * 4             # biases
           + (4 << 20))              # headroom
    vmem_limit = int(min(max(est, 32 << 20), 48 << 20))

    grid = (B // tm,)
    return pl.pallas_call(
        autoencoder_kernel,
        out_shape=jax.ShapeDtypeStruct((B, Q), out_dtype),
        grid_spec=pltpu.PrefetchScalarGridSpec(
            num_scalar_prefetch=0,
            grid=grid,
            in_specs=[
                pl.BlockSpec((tm, Q), lambda i: (i, 0)),                # x tile over batch
                pl.BlockSpec((Q, K), lambda i: (0, 0), **resident),    # Wg^T (bf16, resident)
                pl.BlockSpec((1, K), lambda i: (0, 0), **resident),    # bg
                pl.BlockSpec((K, Q), lambda i: (0, 0), **resident),    # Wh^T (bf16, resident)
                pl.BlockSpec((1, Q), lambda i: (0, 0), **resident),    # bh
            ],
            out_specs=pl.BlockSpec((tm, Q), lambda i: (i, 0)),
        ),
        compiler_params=pltpu.CompilerParams(
            dimension_semantics=("parallel",),
            vmem_limit_bytes=vmem_limit,
        ),
    )(x, gwt, gb, hwt, hb)


def autoencoder_ref(x, g_w, g_b, h_w, h_b):
    """Pure-JAX reference in the original PyTorch layout / f32 precision."""
    inner = x @ g_w.T + g_b
    sinner = jax.nn.sigmoid(inner)
    outer = sinner @ h_w.T + h_b
    return jax.nn.sigmoid(outer)


# TODO(synk): get_weight_norm() is a training-time regularizer helper (sum of squared
# Frobenius norms); it is not part of the forward pass and is not implemented as a kernel.

if __name__ == "__main__":
    # Small shapes consistent with the module: num_question=256, k=128, batch=16.
    B, Q, K = 16, 256, 128

    key = jax.random.PRNGKey(0)
    kx, kgw, kgb, khw, khb = jax.random.split(key, 5)

    # PyTorch nn.Linear-style init: U(-1/sqrt(fan_in), 1/sqrt(fan_in)).
    g_bound = 1.0 / jnp.sqrt(jnp.float32(Q))
    h_bound = 1.0 / jnp.sqrt(jnp.float32(K))
    g_w = jax.random.uniform(kgw, (K, Q), jnp.float32, -g_bound, g_bound)
    g_b = jax.random.uniform(kgb, (K,), jnp.float32, -g_bound, g_bound)
    h_w = jax.random.uniform(khw, (Q, K), jnp.float32, -h_bound, h_bound)
    h_b = jax.random.uniform(khb, (Q,), jnp.float32, -h_bound, h_bound)

    # Example "user vector" batch (ratings in [0, 1]).
    x = jax.random.uniform(kx, (B, Q), jnp.float32, 0.0, 1.0)

    # One-time parameter prep (bf16 + (in, out) layout), then the fused kernel.
    gwt, gb, hwt, hb = prepare_params(g_w, g_b, h_w, h_b)
    out = autoencoder_forward(x, gwt, gb, hwt, hb)
    out = jax.block_until_ready(out)

    ref = autoencoder_ref(x, g_w, g_b, h_w, h_b)
    assert out.shape == (B, Q)
    # Exact tanh-based sigmoid (no approx reciprocal) -> only bf16 matmul-operand error
    # remains; tolerance tightened vs. the previous 2e-2.
    assert jnp.allclose(out, ref, atol=1e-2, rtol=1e-2), "mismatch vs. reference"

    print("KERNEL_OK")
</pallas_src>

<mosaic_0001>
module attributes {stable_mosaic.version = 11 : i64} {
  func.func @autoencoder_kernel(%arg0: i32, %arg1: memref<16x256xf32, #tpu.memory_space<vmem>>, %arg2: memref<256x128xbf16, #tpu.memory_space<vmem>>, %arg3: memref<1x128xf32, #tpu.memory_space<vmem>>, %arg4: memref<128x256xbf16, #tpu.memory_space<vmem>>, %arg5: memref<1x256xf32, #tpu.memory_space<vmem>>, %arg6: memref<16x256xf32, #tpu.memory_space<vmem>>) attributes {dimension_semantics = [#tpu.dimension_semantics<parallel>], iteration_bounds = array<i64: 1>, scalar_prefetch = 0 : i64, scratch_operands = 0 : i64, tpu.core_type = #tpu.core_type<tc>, window_params = [{transform_indices = @transform_0, window_bounds = array<i64: 16, 256>}, {pipeline_mode = #tpu.pipeline_mode<synchronous>, transform_indices = @transform_1, window_bounds = array<i64: 256, 128>}, {pipeline_mode = #tpu.pipeline_mode<synchronous>, transform_indices = @transform_2, window_bounds = array<i64: 1, 128>}, {pipeline_mode = #tpu.pipeline_mode<synchronous>, transform_indices = @transform_3, window_bounds = array<i64: 128, 256>}, {pipeline_mode = #tpu.pipeline_mode<synchronous>, transform_indices = @transform_4, window_bounds = array<i64: 1, 256>}, {transform_indices = @transform_5, window_bounds = array<i64: 16, 256>}]} {
    %c0 = arith.constant 0 : index
    %c0_0 = arith.constant 0 : index
    %0 = vector.load %arg1[%c0, %c0_0] : memref<16x256xf32, #tpu.memory_space<vmem>>, vector<16x256xf32>
    %1 = arith.truncf %0 : vector<16x256xf32> to vector<16x256xbf16>
    %c0_1 = arith.constant 0 : index
    %c0_2 = arith.constant 0 : index
    %2 = vector.load %arg2[%c0_1, %c0_2] : memref<256x128xbf16, #tpu.memory_space<vmem>>, vector<256x128xbf16>
    %cst = arith.constant dense<0.000000e+00> : vector<16x128xf32>
    %3 = tpu.matmul %1, %2, %cst {dimension_numbers = #tpu.dot_dimension_numbers<[1], [0], [0], [1], [0, 0, 1, 1], [], []>} : vector<16x256xbf16>, vector<256x128xbf16>, vector<16x128xf32> -> vector<16x128xf32>
    %c0_3 = arith.constant 0 : index
    %c0_4 = arith.constant 0 : index
    %4 = vector.load %arg3[%c0_3, %c0_4] : memref<1x128xf32, #tpu.memory_space<vmem>>, vector<1x128xf32>
    %5 = vector.broadcast %4 : vector<1x128xf32> to vector<16x128xf32>
    %6 = arith.addf %3, %5 : vector<16x128xf32>
    %cst_5 = arith.constant 5.000000e-01 : f32
    %7 = vector.broadcast %cst_5 : f32 to vector<16x128xf32>
    %8 = arith.mulf %7, %6 : vector<16x128xf32>
    %9 = math.tanh %8 : vector<16x128xf32>
    %cst_6 = arith.constant 5.000000e-01 : f32
    %10 = vector.broadcast %cst_6 : f32 to vector<16x128xf32>
    %11 = arith.mulf %10, %9 : vector<16x128xf32>
    %cst_7 = arith.constant 5.000000e-01 : f32
    %12 = vector.broadcast %cst_7 : f32 to vector<16x128xf32>
    %13 = arith.addf %11, %12 : vector<16x128xf32>
    %14 = arith.truncf %13 : vector<16x128xf32> to vector<16x128xbf16>
    %c0_8 = arith.constant 0 : index
    %c0_9 = arith.constant 0 : index
    %15 = vector.load %arg4[%c0_8, %c0_9] : memref<128x256xbf16, #tpu.memory_space<vmem>>, vector<128x256xbf16>
    %cst_10 = arith.constant dense<0.000000e+00> : vector<16x256xf32>
    %16 = tpu.matmul %14, %15, %cst_10 {dimension_numbers = #tpu.dot_dimension_numbers<[1], [0], [0], [1], [0, 0, 1, 1], [], []>} : vector<16x128xbf16>, vector<128x256xbf16>, vector<16x256xf32> -> vector<16x256xf32>
    %c0_11 = arith.constant 0 : index
    %c0_12 = arith.constant 0 : index
    %17 = vector.load %arg5[%c0_11, %c0_12] : memref<1x256xf32, #tpu.memory_space<vmem>>, vector<1x256xf32>
    %18 = vector.broadcast %17 : vector<1x256xf32> to vector<16x256xf32>
    %19 = arith.addf %16, %18 : vector<16x256xf32>
    %cst_13 = arith.constant 5.000000e-01 : f32
    %20 = vector.broadcast %cst_13 : f32 to vector<16x256xf32>
    %21 = arith.mulf %20, %19 : vector<16x256xf32>
    %22 = math.tanh %21 : vector<16x256xf32>
    %cst_14 = arith.constant 5.000000e-01 : f32
    %23 = vector.broadcast %cst_14 : f32 to vector<16x256xf32>
    %24 = arith.mulf %23, %22 : vector<16x256xf32>
    %cst_15 = arith.constant 5.000000e-01 : f32
    %25 = vector.broadcast %cst_15 : f32 to vector<16x256xf32>
    %26 = arith.addf %24, %25 : vector<16x256xf32>
    %c0_16 = arith.constant 0 : index
    %c0_17 = arith.constant 0 : index
    %27 = vector.load %arg6[%c0_16, %c0_17] : memref<16x256xf32, #tpu.memory_space<vmem>>, vector<16x256xf32>
    tpu.vector_store %arg6[%c0_16, %c0_17], %26 {strides = array<i32>} : memref<16x256xf32, #tpu.memory_space<vmem>>, vector<16x256xf32>,
    return
  }
  func.func @transform_0(%arg0: i32) -> (i32, i32) {
    %c0_i32 = arith.constant 0 : i32
    %c0_i32_0 = arith.constant 0 : i32
    return %arg0, %c0_i32 : i32, i32
  }
  func.func @transform_1(%arg0: i32) -> (i32, i32) {
    %c0_i32 = arith.constant 0 : i32
    %c0_i32_0 = arith.constant 0 : i32
    %c0_i32_1 = arith.constant 0 : i32
    return %c0_i32, %c0_i32_0 : i32, i32
  }
  func.func @transform_2(%arg0: i32) -> (i32, i32) {
    %c0_i32 = arith.constant 0 : i32
    %c0_i32_0 = arith.constant 0 : i32
    %c0_i32_1 = arith.constant 0 : i32
    return %c0_i32, %c0_i32_0 : i32, i32
  }
  func.func @transform_3(%arg0: i32) -> (i32, i32) {
    %c0_i32 = arith.constant 0 : i32
    %c0_i32_0 = arith.constant 0 : i32
    %c0_i32_1 = arith.constant 0 : i32
    return %c0_i32, %c0_i32_0 : i32, i32
  }
  func.func @transform_4(%arg0: i32) -> (i32, i32) {
    %c0_i32 = arith.constant 0 : i32
    %c0_i32_0 = arith.constant 0 : i32
    %c0_i32_1 = arith.constant 0 : i32
    return %c0_i32, %c0_i32_0 : i32, i32
  }
  func.func @transform_5(%arg0: i32) -> (i32, i32) {
    %c0_i32 = arith.constant 0 : i32
    %c0_i32_0 = arith.constant 0 : i32
    return %arg0, %c0_i32 : i32, i32
  }
}

</mosaic_0001>

<llo_original>
// kernel: tpu_custom_call.1
$region0: #{tpu_custom_call.1}
  #allocation0 [shape = 'u32[]', space=smem, size = 0x4, offset = 0x4, fixed_abs, tag = 'smem constant byte address 0x4 - core index']
  #allocation1 [shape = 'u32[144,128]{1,0:T(1,128)}', space=vmem, size = 0x12000, scoped, tag = 'internal scratch']
  %s0 = inlined_call_operand.hbm [shape: f32[16,256], index: 0, kind: input, shape index: {}]
  %s1 = inlined_call_operand.hbm [shape: bf16[256,128], index: 1, kind: input, shape index: {}]
  %s2 = inlined_call_operand.vmem [shape: f32[1,128], index: 2, kind: input, shape index: {}]
  %s3 = inlined_call_operand.hbm [shape: bf16[128,256], index: 3, kind: input, shape index: {}]
  %s4 = inlined_call_operand.vmem [shape: f32[1,256], index: 4, kind: input, shape index: {}]
  %s5 = inlined_call_operand.hbm [shape: f32[16,256], index: 5, kind: output, shape index: {}]
  %s6 = sld [smem:[#allocation0]]
  $region42: #{tpu_custom_call.1} parent=0
    _
  %s8 = ssub.s32 1, %s6
  %s9 = scalar_select 0, %s8, %s6
  $region1: #{tpu_custom_call.1} parent=0
    #allocation2 [shape = 'u8[16384]{0}', space=vmem, size = 0x4000, scoped, tag = 'input window, operand 0, single buffered']
    #allocation3 [shape = 's32[1]{0}', space=sflag, size = 0x4, scoped, tag = 'scoped memory for tpu_custom_call.1']
    #allocation4 [shape = 's32[1]{0}', space=sflag, size = 0x4, scoped, tag = 'scoped memory for tpu_custom_call.1']
    #allocation5 [shape = 'u8[65536]{0}', space=vmem, size = 0x10000, scoped, tag = 'input window, operand 1, single buffered']
    #allocation6 [shape = 's32[1]{0}', space=sflag, size = 0x4, scoped, tag = 'scoped memory for tpu_custom_call.1']
    #allocation7 [shape = 'u8[65536]{0}', space=vmem, size = 0x10000, scoped, tag = 'input window, operand 3, single buffered']
    #allocation8 [shape = 'u8[16384]{0}', space=vmem, size = 0x4000, scoped, tag = 'output window, operand 0, single buffered']
    %10 = vsyncpa [#allocation3], 0
    %11 = vsyncpa [#allocation6], 0
    %12 = vsyncpa [#allocation4], 0
    // Predicated region
    $region2: #{tpu_custom_call.1} parent=1 // pred_check
      _
    $region3: #{tpu_custom_call.1} parent=1 // pred_check_branch
      %14 = sbr.rel (0) target = $region5
    $region4: #{tpu_custom_call.1} parent=1 // pred_region
      %s16 = ssub.s32 512, 512
      %17 = vsyncadd [#allocation3], %s16
      %s18 = sshll.u32 [#allocation2], 4
      %s19 = int_to_ptr.vmem [resolvable:$true] %s18
      %24 = dma.hbm_to_vmem [thread:$0]  %s0, 512, %s19, [#allocation3], 256, 256, 16
    $region5: #{tpu_custom_call.1} parent=1 // pred_fallthru
      _
    // Predicated region
    $region6: #{tpu_custom_call.1} parent=1 // pred_check
      _
    $region7: #{tpu_custom_call.1} parent=1 // pred_check_branch
      %26 = sbr.rel (0) target = $region9
    $region8: #{tpu_custom_call.1} parent=1 // pred_region
      %s28 = ssub.s32 2048, 2048
      %29 = vsyncadd [#allocation6], %s28
      %s30 = sshll.u32 [#allocation5], 4
      %s31 = int_to_ptr.vmem [resolvable:$true] %s30
      %36 = dma.hbm_to_vmem [thread:$0]  %s1, 2048, %s31, [#allocation6], 64, 64, 4
    $region9: #{tpu_custom_call.1} parent=1 // pred_fallthru
      _
    // Predicated region
    $region10: #{tpu_custom_call.1} parent=1 // pred_check
      _
    $region11: #{tpu_custom_call.1} parent=1 // pred_check_branch
      %38 = sbr.rel (0) target = $region13
    $region12: #{tpu_custom_call.1} parent=1 // pred_region
      _
    $region13: #{tpu_custom_call.1} parent=1 // pred_fallthru
      _
    // Predicated region
    $region14: #{tpu_custom_call.1} parent=1 // pred_check
      _
    $region15: #{tpu_custom_call.1} parent=1 // pred_check_branch
      %40 = sbr.rel (0) target = $region17
    $region16: #{tpu_custom_call.1} parent=1 // pred_region
      %s42 = ssub.s32 2048, 2048
      %43 = vsyncadd [#allocation6], %s42
      %s44 = sshll.u32 [#allocation7], 4
      %s45 = int_to_ptr.vmem [resolvable:$true] %s44
      %50 = dma.hbm_to_vmem [thread:$0]  %s3, 2048, %s45, [#allocation6], 128, 128, 8
    $region17: #{tpu_custom_call.1} parent=1 // pred_fallthru
      _
    // Predicated region
    $region18: #{tpu_custom_call.1} parent=1 // pred_check
      _
    $region19: #{tpu_custom_call.1} parent=1 // pred_check_branch
      %52 = sbr.rel (0) target = $region21
    $region20: #{tpu_custom_call.1} parent=1 // pred_region
      _
    $region21: #{tpu_custom_call.1} parent=1 // pred_fallthru
      _
    // Predicated region
    $region22: #{tpu_custom_call.1} parent=1 // pred_check
      _
    $region23: #{tpu_custom_call.1} parent=1 // pred_check_branch
      %54 = sbr.rel (0) target = $region25
    $region24: #{tpu_custom_call.1} parent=1 // pred_region
      %55 = dma.done [#allocation3], 512
    $region25: #{tpu_custom_call.1} parent=1 // pred_fallthru
      _
    // Predicated region
    $region26: #{tpu_custom_call.1} parent=1 // pred_check
      _
    $region27: #{tpu_custom_call.1} parent=1 // pred_check_branch
      %57 = sbr.rel (0) target = $region29
    $region28: #{tpu_custom_call.1} parent=1 // pred_region
      %58 = dma.done [#allocation6], 2048
    $region29: #{tpu_custom_call.1} parent=1 // pred_fallthru
      _
    // Predicated region
    $region30: #{tpu_custom_call.1} parent=1 // pred_check
      _
    $region31: #{tpu_custom_call.1} parent=1 // pred_check_branch
      %60 = sbr.rel (0) target = $region33
    $region32: #{tpu_custom_call.1} parent=1 // pred_region
      %61 = dma.done [#allocation6], 2048
    $region33: #{tpu_custom_call.1} parent=1 // pred_fallthru
      _
    %v63 = vld [vmem:[#allocation2] sm:$0xff]
    %v64 = vld [vmem:[#allocation2 + $0x8] sm:$0xff]
    %v65 = vld [vmem:[#allocation2 + $0x10] sm:$0xff]
    %v66 = vld [vmem:[#allocation2 + $0x18] sm:$0xff]
    %v67 = vpack.c.bf16 %v65, %v63
    %v68 = vpack.c.bf16 %v66, %v64
    %v69 = vld [vmem:[#allocation5] sm:$0xf]
    %v70 = vld [vmem:[#allocation5 + $0x4] sm:$0xf]
    %v71 = vld [vmem:[#allocation5 + $0x8] sm:$0xf]
    %v72 = vld [vmem:[#allocation5 + $0xc] sm:$0xf]
    %v73 = vld [vmem:[#allocation5 + $0x10] sm:$0xf]
    %v74 = vld [vmem:[#allocation5 + $0x14] sm:$0xf]
    %v75 = vld [vmem:[#allocation5 + $0x18] sm:$0xf]
    %v76 = vld [vmem:[#allocation5 + $0x1c] sm:$0xf]
    %v77 = vld [vmem:[#allocation5 + $0x20] sm:$0xf]
    %v78 = vld [vmem:[#allocation5 + $0x24] sm:$0xf]
    %v79 = vld [vmem:[#allocation5 + $0x28] sm:$0xf]
    %v80 = vld [vmem:[#allocation5 + $0x2c] sm:$0xf]
    %v81 = vld [vmem:[#allocation5 + $0x30] sm:$0xf]
    %v82 = vld [vmem:[#allocation5 + $0x34] sm:$0xf]
    %v83 = vld [vmem:[#allocation5 + $0x38] sm:$0xf]
    %v84 = vld [vmem:[#allocation5 + $0x3c] sm:$0xf]
    %v85 = vld [vmem:[#allocation5 + $0x40] sm:$0xf]
    %v86 = vld [vmem:[#allocation5 + $0x44] sm:$0xf]
    %v87 = vld [vmem:[#allocation5 + $0x48] sm:$0xf]
    %v88 = vld [vmem:[#allocation5 + $0x4c] sm:$0xf]
    %v89 = vld [vmem:[#allocation5 + $0x50] sm:$0xf]
    %v90 = vld [vmem:[#allocation5 + $0x54] sm:$0xf]
    %v91 = vld [vmem:[#allocation5 + $0x58] sm:$0xf]
    %v92 = vld [vmem:[#allocation5 + $0x5c] sm:$0xf]
    %v93 = vld [vmem:[#allocation5 + $0x60] sm:$0xf]
    %v94 = vld [vmem:[#allocation5 + $0x64] sm:$0xf]
    %v95 = vld [vmem:[#allocation5 + $0x68] sm:$0xf]
    %v96 = vld [vmem:[#allocation5 + $0x6c] sm:$0xf]
    %v97 = vld [vmem:[#allocation5 + $0x70] sm:$0xf]
    %v98 = vld [vmem:[#allocation5 + $0x74] sm:$0xf]
    %v99 = vld [vmem:[#allocation5 + $0x78] sm:$0xf]
    %v100 = vld [vmem:[#allocation5 + $0x7c] sm:$0xf]
    %v101 = vld [vmem:[%s2] sm:$0x1]
    %v103 = vlaneseq
    %v104 = vshrl.u32 %v103, 7
    %v105 = vsub.s32 0, %v104
    %v106 = vrot.slane %v101, %v105
    %v140 = vunpack.c.l.b16 %v69
    %v141 = vunpack.c.l.b16 %v70
    %v142 = vunpack.c.l.b16 %v71
    %v143 = vunpack.c.l.b16 %v72
    %v144 = vunpack.c.l.b16 %v73
    %v145 = vunpack.c.l.b16 %v74
    %v146 = vunpack.c.l.b16 %v75
    %v147 = vunpack.c.l.b16 %v76
    %v148 = vunpack.c.l.b16 %v77
    %v149 = vunpack.c.l.b16 %v78
    %v150 = vunpack.c.l.b16 %v79
    %v151 = vunpack.c.l.b16 %v80
    %v152 = vunpack.c.l.b16 %v81
    %v153 = vunpack.c.l.b16 %v82
    %v154 = vunpack.c.l.b16 %v83
    %v155 = vunpack.c.l.b16 %v84
    %v156 = vunpack.c.l.b16 %v85
    %v157 = vunpack.c.l.b16 %v86
    %v158 = vunpack.c.l.b16 %v87
    %v159 = vunpack.c.l.b16 %v88
    %v160 = vunpack.c.l.b16 %v89
    %v161 = vunpack.c.l.b16 %v90
    %v162 = vunpack.c.l.b16 %v91
    %v163 = vunpack.c.l.b16 %v92
    %v164 = vunpack.c.l.b16 %v93
    %v165 = vunpack.c.l.b16 %v94
    %v166 = vunpack.c.l.b16 %v95
    %v167 = vunpack.c.l.b16 %v96
    %v168 = vunpack.c.l.b16 %v97
    %v169 = vunpack.c.l.b16 %v98
    %v170 = vunpack.c.l.b16 %v99
    %v171 = vunpack.c.l.b16 %v100
    %v172 = vpack.c.b16 %v141, %v140
    %v173 = vpack.c.b16 %v143, %v142
    %v174 = vpack.c.b16 %v145, %v144
    %v175 = vpack.c.b16 %v147, %v146
    %v176 = vpack.c.b16 %v149, %v148
    %v177 = vpack.c.b16 %v151, %v150
    %v178 = vpack.c.b16 %v153, %v152
    %v179 = vpack.c.b16 %v155, %v154
    %v180 = vpack.c.b16 %v157, %v156
    %v181 = vpack.c.b16 %v159, %v158
    %v182 = vpack.c.b16 %v161, %v160
    %v183 = vpack.c.b16 %v163, %v162
    %v184 = vpack.c.b16 %v165, %v164
    %v185 = vpack.c.b16 %v167, %v166
    %v186 = vpack.c.b16 %v169, %v168
    %v187 = vpack.c.b16 %v171, %v170
    %204 = vmatprep.subr.bf16.mxu0 0
    %205 = vmatpush1.bf16.msra.mxu0 %v172
    %206 = vmatprep.subr.bf16.mxu0 0
    %207 = vmatpush1.bf16.msra.mxu0 %v173
    %208 = vmatprep.subr.bf16.mxu0 0
    %209 = vmatpush1.bf16.msra.mxu0 %v174
    %210 = vmatprep.subr.bf16.mxu0 0
    %211 = vmatpush1.bf16.msra.mxu0 %v175
    %212 = vmatprep.subr.bf16.mxu0 0
    %213 = vmatpush1.bf16.msra.mxu0 %v176
    %214 = vmatprep.subr.bf16.mxu0 0
    %215 = vmatpush1.bf16.msra.mxu0 %v177
    %216 = vmatprep.subr.bf16.mxu0 0
    %217 = vmatpush1.bf16.msra.mxu0 %v178
    %218 = vmatprep.subr.bf16.mxu0 0
    %219 = vmatpush1.bf16.msra.mxu0 %v179
    %220 = vmatprep.subr.bf16.mxu0 0
    %221 = vmatpush1.bf16.msra.mxu0 %v180
    %222 = vmatprep.subr.bf16.mxu0 0
    %223 = vmatpush1.bf16.msra.mxu0 %v181
    %224 = vmatprep.subr.bf16.mxu0 0
    %225 = vmatpush1.bf16.msra.mxu0 %v182
    %226 = vmatprep.subr.bf16.mxu0 0
    %227 = vmatpush1.bf16.msra.mxu0 %v183
    %228 = vmatprep.subr.bf16.mxu0 0
    %229 = vmatpush1.bf16.msra.mxu0 %v184
    %230 = vmatprep.subr.bf16.mxu0 0
    %231 = vmatpush1.bf16.msra.mxu0 %v185
    %232 = vmatprep.subr.bf16.mxu0 0
    %233 = vmatpush1.bf16.msra.mxu0 %v186
    %234 = vmatprep.subr.bf16.mxu0 0
    %235 = vmatpush1.bf16.msra.mxu0 %v187
    %236 = vmatprep.mubr.bf16.mxu0 %v68
    %237 = vmatmul.mubr.bf16.gmra.mrb[0].mxu0 %v67
    %v238 = vpop.f32.mrb[0].mxu0
    %v239 = vadd.f32 %v106, %v238
    %v240 = vpop.f32.mrb[0].mxu0
    %v241 = vpop.f32.mrb[0].mxu0
    %v242 = vadd.f32 %v106, %v241
    %v243 = vpop.f32.mrb[0].mxu0
    %244 = vdwg.mxu0
    %v245 = vmul.f32 %v239, 0.5
    %v246 = vmul.f32 %v242, 0.5
    %v247 = vtanh.pop %v245
    %v248 = vtanh.pop %v246
    %v249 = vmul.f32 %v247, 0.5
    %v250 = vmul.f32 %v248, 0.5
    %v251 = vadd.f32 %v249, 0.5
    %v252 = vadd.f32 %v250, 0.5
    %v253 = vpack.c.bf16 %v252, %v251
    %v254 = vld [vmem:[#allocation7] sm:$0xff]
    %v255 = vld [vmem:[#allocation7 + $0x8] sm:$0xff]
    %v256 = vld [vmem:[#allocation7 + $0x10] sm:$0xff]
    %v257 = vld [vmem:[#allocation7 + $0x18] sm:$0xff]
    %v258 = vld [vmem:[#allocation7 + $0x20] sm:$0xff]
    %v259 = vld [vmem:[#allocation7 + $0x28] sm:$0xff]
    %v260 = vld [vmem:[#allocation7 + $0x30] sm:$0xff]
    %v261 = vld [vmem:[#allocation7 + $0x38] sm:$0xff]
    %v262 = vld [vmem:[#allocation7 + $0x40] sm:$0xff]
    %v263 = vld [vmem:[#allocation7 + $0x48] sm:$0xff]
    %v264 = vld [vmem:[#allocation7 + $0x50] sm:$0xff]
    %v265 = vld [vmem:[#allocation7 + $0x58] sm:$0xff]
    %v266 = vld [vmem:[#allocation7 + $0x60] sm:$0xff]
    %v267 = vld [vmem:[#allocation7 + $0x68] sm:$0xff]
    %v268 = vld [vmem:[#allocation7 + $0x70] sm:$0xff]
    %v269 = vld [vmem:[#allocation7 + $0x78] sm:$0xff]
    %v270 = vld [vmem:[%s4] sm:$0x3]
    %v272 = vlaneseq
    %v273 = vshrl.u32 %v272, 7
    %v274 = vsub.s32 0, %v273
    %v275 = vrot.slane %v270, %v274
    %v276 = vlaneseq
    %v277 = vshrl.u32 %v276, 7
    %v278 = vsub.s32 1, %v277
    %v279 = vrot.slane %v270, %v278
    %v298 = vunpack.c.l.b16 %v254
    %v299 = vunpack.c.h.b16 %v254
    %v300 = vunpack.c.l.b16 %v255
    %v301 = vunpack.c.h.b16 %v255
    %v302 = vunpack.c.l.b16 %v256
    %v303 = vunpack.c.h.b16 %v256
    %v304 = vunpack.c.l.b16 %v257
    %v305 = vunpack.c.h.b16 %v257
    %v306 = vunpack.c.l.b16 %v258
    %v307 = vunpack.c.h.b16 %v258
    %v308 = vunpack.c.l.b16 %v259
    %v309 = vunpack.c.h.b16 %v259
    %v310 = vunpack.c.l.b16 %v260
    %v311 = vunpack.c.h.b16 %v260
    %v312 = vunpack.c.l.b16 %v261
    %v313 = vunpack.c.h.b16 %v261
    %v314 = vunpack.c.l.b16 %v262
    %v315 = vunpack.c.h.b16 %v262
    %v316 = vunpack.c.l.b16 %v263
    %v317 = vunpack.c.h.b16 %v263
    %v318 = vunpack.c.l.b16 %v264
    %v319 = vunpack.c.h.b16 %v264
    %v320 = vunpack.c.l.b16 %v265
    %v321 = vunpack.c.h.b16 %v265
    %v322 = vunpack.c.l.b16 %v266
    %v323 = vunpack.c.h.b16 %v266
    %v324 = vunpack.c.l.b16 %v267
    %v325 = vunpack.c.h.b16 %v267
    %v326 = vunpack.c.l.b16 %v268
    %v327 = vunpack.c.h.b16 %v268
    %v328 = vunpack.c.l.b16 %v269
    %v329 = vunpack.c.h.b16 %v269
    %v330 = vpack.c.b16 %v300, %v298
    %v331 = vpack.c.b16 %v301, %v299
    %v332 = vpack.c.b16 %v304, %v302
    %v333 = vpack.c.b16 %v305, %v303
    %v334 = vpack.c.b16 %v308, %v306
    %v335 = vpack.c.b16 %v309, %v307
    %v336 = vpack.c.b16 %v312, %v310
    %v337 = vpack.c.b16 %v313, %v311
    %v338 = vpack.c.b16 %v316, %v314
    %v339 = vpack.c.b16 %v317, %v315
    %v340 = vpack.c.b16 %v320, %v318
    %v341 = vpack.c.b16 %v321, %v319
    %v342 = vpack.c.b16 %v324, %v322
    %v343 = vpack.c.b16 %v325, %v323
    %v344 = vpack.c.b16 %v328, %v326
    %v345 = vpack.c.b16 %v329, %v327
    %362 = vmatprep.subr.bf16.mxu0 %v331
    %363 = vmatpush1.bf16.msra.mxu0 %v330
    %364 = vmatprep.subr.bf16.mxu0 %v333
    %365 = vmatpush1.bf16.msra.mxu0 %v332
    %366 = vmatprep.subr.bf16.mxu0 %v335
    %367 = vmatpush1.bf16.msra.mxu0 %v334
    %368 = vmatprep.subr.bf16.mxu0 %v337
    %369 = vmatpush1.bf16.msra.mxu0 %v336
    %370 = vmatprep.subr.bf16.mxu0 %v339
    %371 = vmatpush1.bf16.msra.mxu0 %v338
    %372 = vmatprep.subr.bf16.mxu0 %v341
    %373 = vmatpush1.bf16.msra.mxu0 %v340
    %374 = vmatprep.subr.bf16.mxu0 %v343
    %375 = vmatpush1.bf16.msra.mxu0 %v342
    %376 = vmatprep.subr.bf16.mxu0 %v345
    %377 = vmatpush1.bf16.msra.mxu0 %v344
    %378 = vmatprep.subr.bf16.mxu0 0
    %379 = vmatpush1.bf16.msra.mxu0 0
    %380 = vmatprep.subr.bf16.mxu0 0
    %381 = vmatpush1.bf16.msra.mxu0 0
    %382 = vmatprep.subr.bf16.mxu0 0
    %383 = vmatpush1.bf16.msra.mxu0 0
    %384 = vmatprep.subr.bf16.mxu0 0
    %385 = vmatpush1.bf16.msra.mxu0 0
    %386 = vmatprep.subr.bf16.mxu0 0
    %387 = vmatpush1.bf16.msra.mxu0 0
    %388 = vmatprep.subr.bf16.mxu0 0
    %389 = vmatpush1.bf16.msra.mxu0 0
    %390 = vmatprep.subr.bf16.mxu0 0
    %391 = vmatpush1.bf16.msra.mxu0 0
    %392 = vmatprep.subr.bf16.mxu0 0
    %393 = vmatpush1.bf16.msra.mxu0 0
    %394 = vmatprep.mubr.bf16.mxu0 0
    %395 = vmatmul.mubr.bf16.gmra.mrb[0].mxu0 %v253
    %v396 = vpop.f32.mrb[0].mxu0
    %v397 = vadd.f32 %v275, %v396
    %v398 = vpop.f32.mrb[0].mxu0
    %v399 = vadd.f32 %v279, %v398
    %v400 = vpop.f32.mrb[0].mxu0
    %v401 = vadd.f32 %v275, %v400
    %v402 = vpop.f32.mrb[0].mxu0
    %v403 = vadd.f32 %v279, %v402
    %404 = vdwg.mxu0
    %v405 = vmul.f32 %v397, 0.5
    %v406 = vmul.f32 %v399, 0.5
    %v407 = vmul.f32 %v401, 0.5
    %v408 = vmul.f32 %v403, 0.5
    %v409 = vtanh.pop %v405
    %v410 = vtanh.pop %v406
    %v411 = vtanh.pop %v407
    %v412 = vtanh.pop %v408
    %v413 = vmul.f32 %v409, 0.5
    %v414 = vmul.f32 %v410, 0.5
    %v415 = vmul.f32 %v411, 0.5
    %v416 = vmul.f32 %v412, 0.5
    %v417 = vadd.f32 %v413, 0.5
    %v418 = vadd.f32 %v414, 0.5
    %v419 = vadd.f32 %v415, 0.5
    %v420 = vadd.f32 %v416, 0.5
    %421 = vst [vmem:[#allocation8] sm:$0xff] %v417
    %422 = vst [vmem:[#allocation8 + $0x8] sm:$0xff] %v418
    %423 = vst [vmem:[#allocation8 + $0x10] sm:$0xff] %v419
    %424 = vst [vmem:[#allocation8 + $0x18] sm:$0xff] %v420
    // Predicated region
    $region34: #{tpu_custom_call.1} parent=1 // pred_check
      _
    $region35: #{tpu_custom_call.1} parent=1 // pred_check_branch
      %426 = sbr.rel (0) target = $region37
    $region36: #{tpu_custom_call.1} parent=1 // pred_region
      %s428 = ssub.s32 512, 512
      %429 = vsyncadd [#allocation4], %s428
      %s430 = sshll.u32 [#allocation8], 4
      %s431 = int_to_ptr.vmem [resolvable:$true] %s430
      %436 = dma.vmem_to_hbm [thread:$0]  %s431, 512, %s5, [#allocation4], 256, 256, 16
    $region37: #{tpu_custom_call.1} parent=1 // pred_fallthru
      _
    // Predicated region
    $region38: #{tpu_custom_call.1} parent=1 // pred_check
      _
    $region39: #{tpu_custom_call.1} parent=1 // pred_check_branch
      %438 = sbr.rel (0) target = $region41
    $region40: #{tpu_custom_call.1} parent=1 // pred_region
      %439 = dma.done [#allocation4], 512
    $region41: #{tpu_custom_call.1} parent=1 // pred_fallthru
      _
    %440 = vsyncpa [#allocation3], 1
    %441 = vsyncpa [#allocation6], 1
    %442 = vsyncpa [#allocation4], 1

</llo_original>
